<compile_context>
chip_gen: v7x
topology: tpu7x:2x2x1
jax: 0.10.0
libtpu: 0.0.40
codegen_flags: <defaults>
</compile_context>

<pallas_src>
import jax
import jax.numpy as jnp
from jax.experimental import pallas as pl
from jax.experimental.pallas import tpu as pltpu

# Hyper-parameters from the module's __init__ (defaults).
GAMMA_POS = 0
GAMMA_NEG = 4
EPS = 0.1


def _int_pow(x, n):
    """x ** n for a small static non-negative integer n via repeated multiply."""
    if n == 0:
        return jnp.ones_like(x)
    acc = None
    base = x
    while n > 0:
        if n & 1:
            acc = base if acc is None else acc * base
        n >>= 1
        if n:
            base = base * base
    return acc


def _make_kernel(B, C, tb, inv_B):
    def asl_kernel(x_ref, tgt_ref, out_ref, acc_ref):
        i = pl.program_id(0)

        @pl.when(i == 0)
        def _():
            acc_ref[...] = jnp.zeros_like(acc_ref)

        x = x_ref[...].astype(jnp.float32)            # (tb, C) logits (bf16 ok)
        tgt = tgt_ref[...]                            # (tb, 1) int32 class ids

        # Mask rows past the true batch size (last partial tile reads padding).
        row_ids = i * tb + jax.lax.broadcasted_iota(jnp.int32, (tb, 1), 0)
        valid = row_ids < B                           # (tb, 1) bool
        x = jnp.where(valid, x, 0.0)

        # ---- log_softmax(dim=-1) ---- (lane-axis reductions -> XLU)
        m = jnp.max(x, axis=-1, keepdims=True)
        z = x - m
        ez = jnp.exp(z)
        lse = jnp.log(jnp.sum(ez, axis=-1, keepdims=True))
        log_preds = z - lse                           # (tb, C)

        # ---- one-hot targets via iota compare (scatter_ equivalent) ----
        class_ids = jax.lax.broadcasted_iota(jnp.int32, (tb, C), 1)
        is_tgt = class_ids == tgt                     # (tb, C) bool

        xs = jnp.exp(log_preds)                       # softmax probs

        # ---- asymmetric focusing weight ----
        if GAMMA_POS == 0 and isinstance(GAMMA_NEG, int) and GAMMA_NEG >= 0:
            # gamma_pos == 0: base**0 == 1 on the target class; off-target the
            # base collapses to xs, so the weight is xs**gamma_neg.
            asym_w = jnp.where(is_tgt, 1.0, _int_pow(xs, GAMMA_NEG))
        else:
            # general path (kept for configurability of the gammas)
            targets_f = is_tgt.astype(jnp.float32)
            anti = 1.0 - targets_f
            base = 1.0 - xs * targets_f - (1.0 - xs) * anti
            asym_w = base ** (GAMMA_POS * targets_f + GAMMA_NEG * anti)

        # ---- label smoothing (eps > 0 branch) ----
        if EPS > 0:
            smoothed = jnp.where(is_tgt, 1.0 - EPS + EPS / C, EPS / C)
        else:
            smoothed = is_tgt.astype(jnp.float32)

        # ---- loss: per-row sum, masked, accumulated across tiles ----
        loss = -(smoothed * log_preds * asym_w)       # (tb, C)
        per_row = jnp.sum(loss, axis=-1, keepdims=True)   # (tb, 1)
        per_row = jnp.where(valid, per_row, 0.0)
        acc_ref[...] += jnp.sum(per_row, axis=0, keepdims=True)

        @pl.when(i == pl.num_programs(0) - 1)
        def _():
            out_ref[...] = acc_ref[...] * inv_B       # multiply by 1/B, no divide

    return asl_kernel


def asl_single_label(inputs, target, *, block_rows=None):
    """inputs: (B, C) float logits (f32 or bf16); target: (B,) int class ids."""
    B, C = inputs.shape
    tgt = target.astype(jnp.int32).reshape(B, 1)

    itemsize = jnp.dtype(inputs.dtype).itemsize
    if block_rows is None:
        # ~2 MiB per input tile (double-buffered -> ~4 MiB live); safe for
        # v7x's 64 MiB VMEM (32 MiB scoped default) and a fortiori v5e/v6e.
        budget = 2 * 1024 * 1024
        block_rows = max(8, budget // max(1, C * itemsize))
    tb = min(block_rows, B)
    if tb < B:
        tb = max(8, (tb // 8) * 8)                   # keep sublane-aligned tiles
    grid = (pl.cdiv(B, tb),)
    inv_B = 1.0 / B

    out = pl.pallas_call(
        _make_kernel(B, C, tb, inv_B),
        out_shape=jax.ShapeDtypeStruct((1, 1), jnp.float32),
        grid=grid,
        in_specs=[
            pl.BlockSpec((tb, C), lambda i: (i, 0)),
            pl.BlockSpec((tb, 1), lambda i: (i, 0)),
        ],
        out_specs=pl.BlockSpec((1, 1), lambda i: (0, 0)),
        scratch_shapes=[pltpu.VMEM((1, 1), jnp.float32)],
        compiler_params=pltpu.CompilerParams(
            dimension_semantics=("arbitrary",),      # running-accumulator axis
        ),
    )(inputs, tgt)
    return out[0, 0]


def _reference(inputs, target):
    """Pure-JAX reference mirroring the PyTorch forward."""
    B, C = inputs.shape
    log_preds = jax.nn.log_softmax(inputs.astype(jnp.float32), axis=-1)
    targets = jax.nn.one_hot(target, C, dtype=jnp.float32)
    anti = 1.0 - targets
    xs = jnp.exp(log_preds)
    xs_pos = xs * targets
    xs_neg = (1.0 - xs) * anti
    w = jnp.power(1.0 - xs_pos - xs_neg, GAMMA_POS * targets + GAMMA_NEG * anti)
    lp = log_preds * w
    smoothed = targets * (1.0 - EPS) + EPS / C
    return jnp.mean(jnp.sum(-smoothed * lp, axis=-1))


if __name__ == "__main__":
    key = jax.random.PRNGKey(0)
    k1, k2, k3, k4 = jax.random.split(key, 4)

    # Check 1: small f32 case (single tile, exact reference match).
    B, C = 8, 32
    inputs = jax.random.normal(k1, (B, C), dtype=jnp.float32)
    target = jax.random.randint(k2, (B,), 0, C, dtype=jnp.int32)
    loss = asl_single_label(inputs, target)
    jax.block_until_ready(loss)
    ref = _reference(inputs, target)
    assert jnp.allclose(loss, ref, atol=1e-5, rtol=1e-5), (loss, ref)

    # Check 2: bf16 logits, batch tiled with a partial last tile (masking path).
    B2, C2 = 1000, 128
    inputs2 = jax.random.normal(k3, (B2, C2), dtype=jnp.float32).astype(jnp.bfloat16)
    target2 = jax.random.randint(k4, (B2,), 0, C2, dtype=jnp.int32)
    loss2 = asl_single_label(inputs2, target2, block_rows=256)   # grid=(4,), last tile masked
    jax.block_until_ready(loss2)
    ref2 = _reference(inputs2, target2)
    assert jnp.allclose(loss2, ref2, atol=1e-4, rtol=1e-4), (loss2, ref2)

    print("KERNEL_OK")
</pallas_src>

<mosaic_0001>
module attributes {stable_mosaic.version = 11 : i64} {
  func.func @asl_kernel(%arg0: i32, %arg1: memref<8x32xf32, #tpu.memory_space<vmem>>, %arg2: memref<8x1xi32, #tpu.memory_space<vmem>>, %arg3: memref<1x1xf32, #tpu.memory_space<vmem>>, %arg4: memref<1x1xf32, #tpu.memory_space<vmem>>) attributes {dimension_semantics = [#tpu.dimension_semantics<arbitrary>], iteration_bounds = array<i64: 1>, scalar_prefetch = 0 : i64, scratch_operands = 1 : i64, tpu.core_type = #tpu.core_type<tc>, window_params = [{transform_indices = @transform_0, window_bounds = array<i64: 8, 32>}, {transform_indices = @transform_1, window_bounds = array<i64: 8, 1>}, {pipeline_mode = #tpu.pipeline_mode<synchronous>, transform_indices = @transform_2, window_bounds = array<i64: 1, 1>}]} {
    %c0_i32 = arith.constant 0 : i32
    %0 = arith.cmpi eq, %arg0, %c0_i32 : i32
    %1 = arith.extui %0 : i1 to i32
    %c0_i32_0 = arith.constant 0 : i32
    %2 = arith.cmpi ne, %1, %c0_i32_0 : i32
    scf.if %2 {
      %cst_20 = arith.constant 0.000000e+00 : f32
      %52 = vector.broadcast %cst_20 : f32 to vector<1x1xf32>
      %c0_21 = arith.constant 0 : index
      %c0_22 = arith.constant 0 : index
      %53 = vector.load %arg4[%c0_21, %c0_22] : memref<1x1xf32, #tpu.memory_space<vmem>>, vector<1x1xf32>
      tpu.vector_store %arg4[%c0_21, %c0_22], %52 {strides = array<i32>} : memref<1x1xf32, #tpu.memory_space<vmem>>, vector<1x1xf32>,
    } else {
    }
    %c0 = arith.constant 0 : index
    %c0_1 = arith.constant 0 : index
    %3 = vector.load %arg1[%c0, %c0_1] : memref<8x32xf32, #tpu.memory_space<vmem>>, vector<8x32xf32>
    %c0_2 = arith.constant 0 : index
    %c0_3 = arith.constant 0 : index
    %4 = vector.load %arg2[%c0_2, %c0_3] : memref<8x1xi32, #tpu.memory_space<vmem>>, vector<8x1xi32>
    %c8_i32 = arith.constant 8 : i32
    %5 = arith.muli %arg0, %c8_i32 : i32
    %6 = tpu.iota {dimensions = array<i32: 0>} : vector<8x1xi32>
    %7 = vector.broadcast %5 : i32 to vector<8x1xi32>
    %8 = arith.addi %7, %6 : vector<8x1xi32>
    %c8_i32_4 = arith.constant 8 : i32
    %9 = vector.broadcast %c8_i32_4 : i32 to vector<8x1xi32>
    %10 = arith.cmpi slt, %8, %9 : vector<8x1xi32>
    %cst = arith.constant 0.000000e+00 : f32
    %11 = vector.shape_cast %10 : vector<8x1xi1> to vector<8x1xi1>
    %12 = vector.broadcast %11 : vector<8x1xi1> to vector<8x32xi1>
    %13 = vector.broadcast %cst : f32 to vector<8x32xf32>
    %14 = arith.select %12, %3, %13 : vector<8x32xi1>, vector<8x32xf32>
    %cst_5 = arith.constant dense<0xFF800000> : vector<8xf32>
    %15 = vector.multi_reduction <maximumf>, %14, %cst_5 [1] : vector<8x32xf32> to vector<8xf32>
    %16 = vector.shape_cast %15 : vector<8xf32> to vector<8x1xf32>
    %17 = vector.broadcast %16 : vector<8x1xf32> to vector<8x32xf32>
    %18 = arith.subf %14, %17 : vector<8x32xf32>
    %19 = math.exp %18 : vector<8x32xf32>
    %cst_6 = arith.constant dense<0.000000e+00> : vector<8xf32>
    %20 = vector.multi_reduction <add>, %19, %cst_6 [1] : vector<8x32xf32> to vector<8xf32>
    %21 = vector.shape_cast %20 : vector<8xf32> to vector<8x1xf32>
    %22 = math.log %21 : vector<8x1xf32>
    %23 = vector.broadcast %22 : vector<8x1xf32> to vector<8x32xf32>
    %24 = arith.subf %18, %23 : vector<8x32xf32>
    %25 = tpu.iota {dimensions = array<i32: 1>} : vector<8x32xi32>
    %26 = vector.broadcast %4 : vector<8x1xi32> to vector<8x32xi32>
    %27 = arith.cmpi eq, %25, %26 : vector<8x32xi32>
    %28 = math.exp %24 : vector<8x32xf32>
    %29 = arith.mulf %28, %28 : vector<8x32xf32>
    %30 = arith.mulf %29, %29 : vector<8x32xf32>
    %cst_7 = arith.constant 1.000000e+00 : f32
    %31 = vector.broadcast %cst_7 : f32 to vector<8x32xf32>
    %32 = arith.select %27, %31, %30 : vector<8x32xi1>, vector<8x32xf32>
    %cst_8 = arith.constant 0.903124988 : f32
    %cst_9 = arith.constant 3.125000e-03 : f32
    %33 = vector.broadcast %cst_8 : f32 to vector<8x32xf32>
    %34 = vector.broadcast %cst_9 : f32 to vector<8x32xf32>
    %35 = arith.select %27, %33, %34 : vector<8x32xi1>, vector<8x32xf32>
    %36 = arith.mulf %35, %24 : vector<8x32xf32>
    %37 = arith.mulf %36, %32 : vector<8x32xf32>
    %cst_10 = arith.constant 0.000000e+00 : f32
    %38 = vector.broadcast %cst_10 : f32 to vector<8x32xf32>
    %39 = arith.subf %38, %37 : vector<8x32xf32>
    %cst_11 = arith.constant dense<0.000000e+00> : vector<8xf32>
    %40 = vector.multi_reduction <add>, %39, %cst_11 [1] : vector<8x32xf32> to vector<8xf32>
    %41 = vector.shape_cast %40 : vector<8xf32> to vector<8x1xf32>
    %cst_12 = arith.constant 0.000000e+00 : f32
    %42 = vector.broadcast %cst_12 : f32 to vector<8x1xf32>
    %43 = arith.select %10, %41, %42 : vector<8x1xi1>, vector<8x1xf32>
    %c0_13 = arith.constant 0 : index
    %c0_14 = arith.constant 0 : index
    %44 = vector.load %arg4[%c0_13, %c0_14] : memref<1x1xf32, #tpu.memory_space<vmem>>, vector<1x1xf32>
    %cst_15 = arith.constant dense<0.000000e+00> : vector<1xf32>
    %45 = vector.multi_reduction <add>, %43, %cst_15 [0] : vector<8x1xf32> to vector<1xf32>
    %46 = vector.shape_cast %45 : vector<1xf32> to vector<1x1xf32>
    %47 = arith.addf %44, %46 : vector<1x1xf32>
    %c0_16 = arith.constant 0 : index
    %c0_17 = arith.constant 0 : index
    %48 = vector.load %arg4[%c0_16, %c0_17] : memref<1x1xf32, #tpu.memory_space<vmem>>, vector<1x1xf32>
    tpu.vector_store %arg4[%c0_16, %c0_17], %47 {strides = array<i32>} : memref<1x1xf32, #tpu.memory_space<vmem>>, vector<1x1xf32>,
    %c0_i32_18 = arith.constant 0 : i32
    %49 = arith.cmpi eq, %arg0, %c0_i32_18 : i32
    %50 = arith.extui %49 : i1 to i32
    %c0_i32_19 = arith.constant 0 : i32
    %51 = arith.cmpi ne, %50, %c0_i32_19 : i32
    scf.if %51 {
      %c0_20 = arith.constant 0 : index
      %c0_21 = arith.constant 0 : index
      %52 = vector.load %arg4[%c0_20, %c0_21] : memref<1x1xf32, #tpu.memory_space<vmem>>, vector<1x1xf32>
      %cst_22 = arith.constant 1.250000e-01 : f32
      %53 = vector.broadcast %cst_22 : f32 to vector<1x1xf32>
      %54 = arith.mulf %52, %53 : vector<1x1xf32>
      %c0_23 = arith.constant 0 : index
      %c0_24 = arith.constant 0 : index
      %55 = vector.load %arg3[%c0_23, %c0_24] : memref<1x1xf32, #tpu.memory_space<vmem>>, vector<1x1xf32>
      tpu.vector_store %arg3[%c0_23, %c0_24], %54 {strides = array<i32>} : memref<1x1xf32, #tpu.memory_space<vmem>>, vector<1x1xf32>,
    } else {
    }
    return
  }
  func.func @transform_0(%arg0: i32) -> (i32, i32) {
    %c0_i32 = arith.constant 0 : i32
    %c0_i32_0 = arith.constant 0 : i32
    return %arg0, %c0_i32 : i32, i32
  }
  func.func @transform_1(%arg0: i32) -> (i32, i32) {
    %c0_i32 = arith.constant 0 : i32
    %c0_i32_0 = arith.constant 0 : i32
    return %arg0, %c0_i32 : i32, i32
  }
  func.func @transform_2(%arg0: i32) -> (i32, i32) {
    %c0_i32 = arith.constant 0 : i32
    %c0_i32_0 = arith.constant 0 : i32
    %c0_i32_1 = arith.constant 0 : i32
    return %c0_i32, %c0_i32_0 : i32, i32
  }
}

</mosaic_0001>

<llo_original>
// kernel: tpu_custom_call.1
$region0: #{tpu_custom_call.1}
  #allocation0 [shape = 'u32[]', space=smem, size = 0x4, offset = 0x4, fixed_abs, tag = 'smem constant byte address 0x4 - core index']
  #allocation1 [shape = 'u32[144,128]{1,0:T(1,128)}', space=vmem, size = 0x12000, scoped, tag = 'internal scratch']
  #allocation2 [shape = 'f32[1,1]{1,0:T(1,128)}', space=vmem, size = 0x200, scoped, tag = 'scratch operand']
  %s0 = inlined_call_operand.vmem [shape: f32[8,32], index: 0, kind: input, shape index: {}]
  %s1 = inlined_call_operand.vmem [shape: s32[8,1], index: 1, kind: input, shape index: {}]
  %s2 = inlined_call_operand.hbm [shape: f32[1,1], index: 2, kind: output, shape index: {}]
  %s3 = sld [smem:[#allocation0]]
  $region26: #{tpu_custom_call.1} parent=0
    _
  %s5 = ssub.s32 1, %s3
  %s6 = scalar_select 0, %s5, %s3
  $region1: #{tpu_custom_call.1} parent=0
    #allocation3 [shape = 'u8[512]{0}', space=vmem, size = 0x400, scoped, tag = 'output window, operand 0, single buffered']
    #allocation4 [shape = 's32[1]{0}', space=sflag, size = 0x4, scoped, tag = 'scoped memory for tpu_custom_call.1']
    %7 = vsyncpa [#allocation4], 0
    // Predicated region
    $region2: #{tpu_custom_call.1} parent=1 // pred_check
      _
    $region3: #{tpu_custom_call.1} parent=1 // pred_check_branch
      %9 = sbr.rel (0) target = $region5
    $region4: #{tpu_custom_call.1} parent=1 // pred_region
      _
    $region5: #{tpu_custom_call.1} parent=1 // pred_fallthru
      _
    // Predicated region
    $region6: #{tpu_custom_call.1} parent=1 // pred_check
      _
    $region7: #{tpu_custom_call.1} parent=1 // pred_check_branch
      %11 = sbr.rel (0) target = $region9
    $region8: #{tpu_custom_call.1} parent=1 // pred_region
      _
    $region9: #{tpu_custom_call.1} parent=1 // pred_fallthru
      _
    %p12 = scmp.eq.s32.totalorder 0, 0
    // Predicated region
    $region10: #{tpu_custom_call.1} parent=1 // pred_check
      %p13 = pneg %p12
    $region11: #{tpu_custom_call.1} parent=1 // pred_check_branch
      %15 = sbr.rel (%p13) target = $region13
    $region12: #{tpu_custom_call.1} parent=1 // pred_region
      %vm16 = vcmask 0
      %17 = vst.msk [vmem:[#allocation2] sm:$0x1] %vm16, 0.0
    $region13: #{tpu_custom_call.1} parent=1 // pred_fallthru
      _
    %v18 = vld [vmem:[%s0] sm:$0xff]
    %v19 = vld [vmem:[%s1] sm:$0xff]
    %s20 = smul.u32 0, 8
    %v21 = vlaneseq
    %v22 = vshrl.u32 %v21, 7
    %v23 = vstv %s20
    %v24 = vadd.s32 %v23, %v22
    %vm25 = vcmp.lt.s32.totalorder %v24, 8
    %v26 = vsel %vm25, 1, 0
    %vm27 = vcmp.eq.s32.totalorder %v26, 1
    %v28 = vsel %vm27, %v18, 0.0
    %vm29 = vcmask 261120
    %v30 = vsel %vm29, %v28, -inf
    %31 = vmax.xlane.f32.xlu0 %v30
    %v32 = vpop.xlane.xlu0 %31
    %v33 = vsub.f32 %v28, %v32
    %v34 = vmul.f32 %v33, 1.442695
    %v35 = vpow.pop %v34
    %v36 = vsel %vm29, %v35, 0.0
    %37 = vadd.xlane.f32.xlu0 %v36
    %v38 = vpop.xlane.xlu0 %37
    %v39 = vlog2.pop %v38
    %v40 = vmul.f32 %v39, 0.6931472
    %v41 = vsub.f32 %v33, %v40
    %v42 = vlaneseq
    %v43 = vand.u32 %v42, 127
    %44 = vset.pattern.permute.xlu0 0
    %45 = vperm.xlu0 %44, %v19
    %v46 = vpop.permute.xlu0 %45
    %vm47 = vcmp.eq.s32.totalorder %v43, %v46
    %v48 = vmul.f32 %v41, 1.442695
    %v49 = vpow.pop %v48
    %v50 = vmul.f32 %v49, %v49
    %v51 = vmul.f32 %v50, %v50
    %v52 = vsel %vm47, 1.0, %v51
    %v53 = vsel %vm47, 0.903125, 0.003125
    %v54 = vmul.f32 %v53, %v41
    %v55 = vmul.f32 %v54, %v52
    %v56 = vsub.f32 0.0, %v55
    %v57 = vsel %vm29, %v56, 0.0
    %58 = vadd.xlane.f32.xlu0 %v57
    %v59 = vpop.xlane.xlu0 %58
    %v60 = vsel %vm25, %v59, 0.0
    %v61 = vld [vmem:[#allocation2] sm:$0x1]
    %v62 = vrot.slane %v60, 4
    %v63 = vadd.f32 %v60, %v62
    %v64 = vrot.slane %v63, 2
    %v65 = vadd.f32 %v63, %v64
    %v66 = vrot.slane %v65, 1
    %v67 = vadd.f32 %v65, %v66
    %v68 = vadd.f32 %v61, %v67
    %vm69 = vcmask 0
    %70 = vst.msk [vmem:[#allocation2] sm:$0x1] %vm69, %v68
    // Predicated region
    $region14: #{tpu_custom_call.1} parent=1 // pred_check
      %p71 = pneg %p12
    $region15: #{tpu_custom_call.1} parent=1 // pred_check_branch
      %73 = sbr.rel (%p71) target = $region17
    $region16: #{tpu_custom_call.1} parent=1 // pred_region
      %v74 = vld [vmem:[#allocation2] sm:$0x1]
      %v75 = vmul.f32 %v74, 0.125
      %76 = vst.msk [vmem:[#allocation3] sm:$0x1] %vm69, %v75
    $region17: #{tpu_custom_call.1} parent=1 // pred_fallthru
      _
    // Predicated region
    $region18: #{tpu_custom_call.1} parent=1 // pred_check
      _
    $region19: #{tpu_custom_call.1} parent=1 // pred_check_branch
      %78 = sbr.rel (0) target = $region21
    $region20: #{tpu_custom_call.1} parent=1 // pred_region
      %s80 = ssub.s32 16, 16
      %81 = vsyncadd [#allocation4], %s80
      %s83 = sshll.u32 [#allocation3], 4
      %s84 = int_to_ptr.vmem [resolvable:$true] %s83
      %86 = dma.vmem_to_hbm [thread:$0]  %s84, 16, %s2, [#allocation4]
    $region21: #{tpu_custom_call.1} parent=1 // pred_fallthru
      _
    // Predicated region
    $region22: #{tpu_custom_call.1} parent=1 // pred_check
      _
    $region23: #{tpu_custom_call.1} parent=1 // pred_check_branch
      %88 = sbr.rel (0) target = $region25
    $region24: #{tpu_custom_call.1} parent=1 // pred_region
      %89 = dma.done [#allocation4], 16
    $region25: #{tpu_custom_call.1} parent=1 // pred_fallthru
      _
    %90 = vsyncpa [#allocation4], 1

</llo_original>
